<compile_context>
chip_gen: v7x
topology: tpu7x:2x2x1
jax: 0.10.0
libtpu: 0.0.40
codegen_flags: <defaults>
</compile_context>

<pallas_src>
import functools

import jax
import jax.numpy as jnp
import numpy as np
from jax.experimental import pallas as pl
from jax.experimental.pallas import tpu as pltpu

# bf16 operands for every MXU matmul (f32 accumulate); element-wise math stays f32.
MXU_DTYPE = jnp.bfloat16


# ----------------------------- kernels ---------------------------------------
def _sage_proj_kernel(h_ref, wp_ref, bp_ref, ws_ref, hp_ref, zs_ref):
    """Fused per-node projections: h_pool = relu(h@Wp + bp), z_self = h@Ws.

    The h tile is loaded (and cast) once and reused by both matmuls."""
    h = h_ref[...].astype(MXU_DTYPE)                                # [TN, Fin]
    hp = jnp.dot(h, wp_ref[...].astype(MXU_DTYPE),
                 preferred_element_type=jnp.float32)                # [TN, Fin]
    hp = jnp.maximum(hp + bp_ref[...].astype(jnp.float32), 0.0)     # ReLU(fc_pool)
    hp_ref[...] = hp.astype(hp_ref.dtype)
    zs_ref[...] = jnp.dot(h, ws_ref[...].astype(MXU_DTYPE),
                          preferred_element_type=jnp.float32).astype(zs_ref.dtype)


def _sage_agg_kernel(adj_ref, hp_ref, zs_ref, wn_ref, b_ref, out_ref, acc_ref,
                     *, apply_act):
    """Streaming max-pool aggregation over src tiles + combine on the last step.

    grid = (dst_tiles, src_tiles); src is the reduction ("arbitrary") axis."""
    s = pl.program_id(1)

    @pl.when(s == 0)
    def _init():
        acc_ref[...] = jnp.zeros_like(acc_ref)

    mask = adj_ref[...] > 0                       # [TN, TS] (int8 adjacency tile)
    hp = hp_ref[...]                              # [TS, Fin] f32, >= 0 (ReLU'd)
    # masked element-wise max over incoming edges; 0-fill is exact since hp >= 0.
    cand = jnp.max(jnp.where(mask[:, :, None], hp[None, :, :], 0.0), axis=1)
    acc_ref[...] = jnp.maximum(acc_ref[...], cand)

    @pl.when(s == pl.num_programs(1) - 1)
    def _finalize():
        y = jnp.dot(acc_ref[...].astype(MXU_DTYPE),
                    wn_ref[...].astype(MXU_DTYPE),
                    preferred_element_type=jnp.float32)             # neigh @ W_neigh
        y = y + zs_ref[...] + b_ref[...].astype(jnp.float32)        # + self proj + bias
        if apply_act:                                               # ELU
            y = jnp.where(y > 0, y, jnp.expm1(jnp.minimum(y, 0.0)))
        out_ref[...] = y.astype(out_ref.dtype)


def _linear_kernel(h_ref, w_ref, b_ref, out_ref):
    y = jnp.dot(h_ref[...].astype(MXU_DTYPE), w_ref[...].astype(MXU_DTYPE),
                preferred_element_type=jnp.float32)
    out_ref[...] = (y + b_ref[...].astype(jnp.float32)).astype(out_ref.dtype)


# ----------------------------- wrappers ---------------------------------------
def _node_tile(n, tile):
    return tile if n % tile == 0 else n


def sage_pool_layer(h, adj_i8, Wp, bp, Ws, Wn, b, *, apply_act, tile_nodes=128):
    """One DGL SAGEConv('pool') layer. h: [N, Fin] f32, adj_i8: [N, N] int8."""
    N, Fin = h.shape
    Fout = Ws.shape[1]
    tn = _node_tile(N, tile_nodes)     # dst/node tile (sublane axis, mult of 8 or full)
    ts = tn                            # src tile

    # ---- kernel A: fused projections, node-parallel, lane-dense outputs ----
    hp, zs = pl.pallas_call(
        _sage_proj_kernel,
        out_shape=(jax.ShapeDtypeStruct((N, Fin), jnp.float32),
                   jax.ShapeDtypeStruct((N, Fout), jnp.float32)),
        grid_spec=pltpu.PrefetchScalarGridSpec(
            num_scalar_prefetch=0,
            grid=(N // tn,),
            in_specs=[
                pl.BlockSpec((tn, Fin), lambda i: (i, 0)),     # h tile
                pl.BlockSpec((Fin, Fin), lambda i: (0, 0)),    # W_pool
                pl.BlockSpec((1, Fin), lambda i: (0, 0)),      # b_pool
                pl.BlockSpec((Fin, Fout), lambda i: (0, 0)),   # W_self
            ],
            out_specs=(pl.BlockSpec((tn, Fin), lambda i: (i, 0)),
                       pl.BlockSpec((tn, Fout), lambda i: (i, 0))),
        ),
        compiler_params=pltpu.CompilerParams(dimension_semantics=("parallel",)),
        cost_estimate=pl.CostEstimate(
            flops=2 * N * Fin * (Fin + Fout),
            transcendentals=0,
            bytes_accessed=4 * (2 * N * Fin + Fin * Fin + Fin * Fout + Fin
                                + N * Fout)),
    )(h, Wp, bp, Ws)

    # ---- kernel B: streamed max-pool aggregation + combine ----
    grid = (N // tn, N // ts)          # (dst tiles [parallel], src tiles [reduction])
    kern = functools.partial(_sage_agg_kernel, apply_act=apply_act)
    out = pl.pallas_call(
        kern,
        out_shape=jax.ShapeDtypeStruct((N, Fout), jnp.float32),
        grid_spec=pltpu.PrefetchScalarGridSpec(
            num_scalar_prefetch=0,
            grid=grid,
            in_specs=[
                pl.BlockSpec((tn, ts), lambda d, s: (d, s)),      # adjacency (int8)
                pl.BlockSpec((ts, Fin), lambda d, s: (s, 0)),     # h_pool (src tile)
                pl.BlockSpec((tn, Fout), lambda d, s: (d, 0)),    # z_self (dst tile)
                pl.BlockSpec((Fin, Fout), lambda d, s: (0, 0)),   # W_neigh
                pl.BlockSpec((1, Fout), lambda d, s: (0, 0)),     # bias
            ],
            out_specs=pl.BlockSpec((tn, Fout), lambda d, s: (d, 0)),
            scratch_shapes=[pltpu.VMEM((tn, Fin), jnp.float32)],  # running max
        ),
        compiler_params=pltpu.CompilerParams(
            dimension_semantics=("parallel", "arbitrary")),
        cost_estimate=pl.CostEstimate(
            flops=2 * N * N * Fin + 2 * N * Fin * Fout,
            transcendentals=(N * Fout if apply_act else 0),
            bytes_accessed=N * N + 4 * (N * Fin + 2 * N * Fout
                                        + Fin * Fout + Fout)),
    )(adj_i8, hp, zs, Wn, b)
    return out


def linear_layer(h, W, b, *, tile_nodes=128):
    """nn.Linear (gnn_out): h @ W + b with W stored [Fin, Fout]."""
    N, Fin = h.shape
    Fout = W.shape[1]
    tn = _node_tile(N, tile_nodes)
    return pl.pallas_call(
        _linear_kernel,
        out_shape=jax.ShapeDtypeStruct((N, Fout), jnp.float32),
        grid_spec=pltpu.PrefetchScalarGridSpec(
            num_scalar_prefetch=0,
            grid=(N // tn,),
            in_specs=[pl.BlockSpec((tn, Fin), lambda i: (i, 0)),
                      pl.BlockSpec((Fin, Fout), lambda i: (0, 0)),
                      pl.BlockSpec((1, Fout), lambda i: (0, 0))],
            out_specs=pl.BlockSpec((tn, Fout), lambda i: (i, 0)),
        ),
        compiler_params=pltpu.CompilerParams(dimension_semantics=("parallel",)),
        cost_estimate=pl.CostEstimate(
            flops=2 * N * Fin * Fout, transcendentals=0,
            bytes_accessed=4 * (N * Fin + Fin * Fout + Fout + N * Fout)),
    )(h, W, b)


def sagenet_forward(params, adj_i8, fvs):
    """Mirrors SAGENet.forward(g): n_embed = SAGE(g), n_out = gnn_out(n_embed)."""
    h = fvs
    layers = params["sage"]
    for i, p in enumerate(layers):
        h = sage_pool_layer(h, adj_i8, p["Wp"], p["bp"], p["Ws"], p["Wn"], p["b"],
                            apply_act=(i < len(layers) - 1))   # last SAGEConv: no act
    n_embed = h
    n_out = linear_layer(n_embed, params["Wout"], params["bout"])
    return n_out, n_embed


# ----------------------------- params / reference -----------------------------
def init_params(key, num_layers, fv_dim, num_hiddens, node_embed_dim, out_ch):
    """Deterministic synthetic params matching SAGE + gnn_out shapes."""
    layer_io = []
    fin = fv_dim
    for l in range(num_layers):
        layer_io.append((fin, num_hiddens[l]))
        fin = num_hiddens[l]
    layer_io.append((fin, node_embed_dim))        # final SAGEConv (no activation)

    sage_params = []
    for fi, fo in layer_io:
        key, k1, k2, k3, k4, k5 = jax.random.split(key, 6)
        s = 1.0 / np.sqrt(fi)
        sage_params.append(dict(
            Wp=jax.random.normal(k1, (fi, fi), jnp.float32) * s,
            bp=jax.random.normal(k2, (1, fi), jnp.float32) * 0.1,
            Ws=jax.random.normal(k3, (fi, fo), jnp.float32) * s,
            Wn=jax.random.normal(k4, (fi, fo), jnp.float32) * s,
            b=jax.random.normal(k5, (1, fo), jnp.float32) * 0.1,
        ))
    key, k6, k7 = jax.random.split(key, 3)
    Wout = jax.random.normal(k6, (node_embed_dim, out_ch), jnp.float32) / np.sqrt(node_embed_dim)
    bout = jax.random.normal(k7, (1, out_ch), jnp.float32) * 0.1
    return dict(sage=sage_params, Wout=Wout, bout=bout)


def _mm(a, b):   # same precision policy as the kernels (bf16 operands, f32 acc)
    return jnp.dot(a.astype(MXU_DTYPE), b.astype(MXU_DTYPE),
                   preferred_element_type=jnp.float32)


def _sage_layer_ref(h, adj, Wp, bp, Ws, Wn, b, apply_act):
    hp = jnp.maximum(_mm(h, Wp) + bp, 0.0)
    mask = adj > 0
    nb = jnp.max(jnp.where(mask[:, :, None], hp[None, :, :], 0.0), axis=1)
    y = _mm(h, Ws) + _mm(nb, Wn) + b
    if apply_act:
        y = jnp.where(y > 0, y, jnp.expm1(jnp.minimum(y, 0.0)))
    return y


def sagenet_forward_ref(params, adj, fvs):
    h = fvs
    layers = params["sage"]
    for i, p in enumerate(layers):
        h = _sage_layer_ref(h, adj, p["Wp"], p["bp"], p["Ws"], p["Wn"], p["b"],
                            apply_act=(i < len(layers) - 1))
    n_embed = h
    n_out = _mm(n_embed, params["Wout"]) + params["bout"]
    return n_out, n_embed


# ----------------------------- test -------------------------------------------
if __name__ == "__main__":
    # small, module-consistent shapes
    N = 256                 # graph nodes (2 node tiles -> exercises parallel dst axis
                            # and the streamed src reduction)
    fv_dim = 32             # SAGE in_dim (node feature width)
    num_layers = 2
    num_hiddens = [64, 64]
    node_embed_dim = 32     # SAGE out_ch == gnn_out in_features
    out_ch = 8              # gnn_out out_features

    key = jax.random.PRNGKey(0)
    key, kf, ka = jax.random.split(key, 3)
    fvs = jax.random.normal(kf, (N, fv_dim), jnp.float32)        # g.ndata['fvs']
    # dense adjacency adj[dst, src] = 1 if edge src->dst, stored as int8 (4x less
    # HBM/VMEM traffic than f32); self-loops added (DGL forbids zero-in-degree nodes).
    adj = jax.random.uniform(ka, (N, N)) < 0.05
    adj = jnp.logical_or(adj, jnp.eye(N, dtype=bool)).astype(jnp.int8)

    params = init_params(key, num_layers, fv_dim, num_hiddens, node_embed_dim, out_ch)

    n_out, n_embed = sagenet_forward(params, adj, fvs)
    n_out = jax.block_until_ready(n_out)
    n_embed = jax.block_until_ready(n_embed)

    n_out_ref, n_embed_ref = sagenet_forward_ref(params, adj, fvs)
    assert n_out.shape == (N, out_ch) and n_embed.shape == (N, node_embed_dim)
    np.testing.assert_allclose(np.asarray(n_embed), np.asarray(n_embed_ref),
                               rtol=1e-2, atol=1e-2)
    np.testing.assert_allclose(np.asarray(n_out), np.asarray(n_out_ref),
                               rtol=1e-2, atol=1e-2)
    print("KERNEL_OK")
</pallas_src>

<mosaic_0001>
module attributes {stable_mosaic.version = 11 : i64} {
  func.func @_sage_proj_kernel(%arg0: i32, %arg1: memref<128x32xf32, #tpu.memory_space<vmem>>, %arg2: memref<32x32xf32, #tpu.memory_space<vmem>>, %arg3: memref<1x32xf32, #tpu.memory_space<vmem>>, %arg4: memref<32x64xf32, #tpu.memory_space<vmem>>, %arg5: memref<128x32xf32, #tpu.memory_space<vmem>>, %arg6: memref<128x64xf32, #tpu.memory_space<vmem>>) attributes {dimension_semantics = [#tpu.dimension_semantics<parallel>], iteration_bounds = array<i64: 2>, scalar_prefetch = 0 : i64, scratch_operands = 0 : i64, tpu.core_type = #tpu.core_type<tc>, window_params = [{transform_indices = @transform_0, window_bounds = array<i64: 128, 32>}, {pipeline_mode = #tpu.pipeline_mode<synchronous>, transform_indices = @transform_1, window_bounds = array<i64: 32, 32>}, {pipeline_mode = #tpu.pipeline_mode<synchronous>, transform_indices = @transform_2, window_bounds = array<i64: 1, 32>}, {pipeline_mode = #tpu.pipeline_mode<synchronous>, transform_indices = @transform_3, window_bounds = array<i64: 32, 64>}, {transform_indices = @transform_4, window_bounds = array<i64: 128, 32>}, {transform_indices = @transform_5, window_bounds = array<i64: 128, 64>}]} {
    %c0 = arith.constant 0 : index
    %c0_0 = arith.constant 0 : index
    %0 = vector.load %arg1[%c0, %c0_0] : memref<128x32xf32, #tpu.memory_space<vmem>>, vector<128x32xf32>
    %1 = arith.truncf %0 : vector<128x32xf32> to vector<128x32xbf16>
    %c0_1 = arith.constant 0 : index
    %c0_2 = arith.constant 0 : index
    %2 = vector.load %arg2[%c0_1, %c0_2] : memref<32x32xf32, #tpu.memory_space<vmem>>, vector<32x32xf32>
    %3 = arith.truncf %2 : vector<32x32xf32> to vector<32x32xbf16>
    %cst = arith.constant dense<0.000000e+00> : vector<128x32xf32>
    %4 = tpu.matmul %1, %3, %cst {dimension_numbers = #tpu.dot_dimension_numbers<[1], [0], [0], [1], [0, 0, 1, 1], [], []>} : vector<128x32xbf16>, vector<32x32xbf16>, vector<128x32xf32> -> vector<128x32xf32>
    %c0_3 = arith.constant 0 : index
    %c0_4 = arith.constant 0 : index
    %5 = vector.load %arg3[%c0_3, %c0_4] : memref<1x32xf32, #tpu.memory_space<vmem>>, vector<1x32xf32>
    %6 = vector.broadcast %5 : vector<1x32xf32> to vector<128x32xf32>
    %7 = arith.addf %4, %6 : vector<128x32xf32>
    %cst_5 = arith.constant 0.000000e+00 : f32
    %8 = vector.broadcast %cst_5 : f32 to vector<128x32xf32>
    %9 = arith.maximumf %7, %8 : vector<128x32xf32>
    %c0_6 = arith.constant 0 : index
    %c0_7 = arith.constant 0 : index
    %10 = vector.load %arg5[%c0_6, %c0_7] : memref<128x32xf32, #tpu.memory_space<vmem>>, vector<128x32xf32>
    tpu.vector_store %arg5[%c0_6, %c0_7], %9 {strides = array<i32>} : memref<128x32xf32, #tpu.memory_space<vmem>>, vector<128x32xf32>,
    %c0_8 = arith.constant 0 : index
    %c0_9 = arith.constant 0 : index
    %11 = vector.load %arg4[%c0_8, %c0_9] : memref<32x64xf32, #tpu.memory_space<vmem>>, vector<32x64xf32>
    %12 = arith.truncf %11 : vector<32x64xf32> to vector<32x64xbf16>
    %cst_10 = arith.constant dense<0.000000e+00> : vector<128x64xf32>
    %13 = tpu.matmul %1, %12, %cst_10 {dimension_numbers = #tpu.dot_dimension_numbers<[1], [0], [0], [1], [0, 0, 1, 1], [], []>} : vector<128x32xbf16>, vector<32x64xbf16>, vector<128x64xf32> -> vector<128x64xf32>
    %c0_11 = arith.constant 0 : index
    %c0_12 = arith.constant 0 : index
    %14 = vector.load %arg6[%c0_11, %c0_12] : memref<128x64xf32, #tpu.memory_space<vmem>>, vector<128x64xf32>
    tpu.vector_store %arg6[%c0_11, %c0_12], %13 {strides = array<i32>} : memref<128x64xf32, #tpu.memory_space<vmem>>, vector<128x64xf32>,
    return
  }
  func.func @transform_0(%arg0: i32) -> (i32, i32) {
    %c0_i32 = arith.constant 0 : i32
    %c0_i32_0 = arith.constant 0 : i32
    return %arg0, %c0_i32 : i32, i32
  }
  func.func @transform_1(%arg0: i32) -> (i32, i32) {
    %c0_i32 = arith.constant 0 : i32
    %c0_i32_0 = arith.constant 0 : i32
    %c0_i32_1 = arith.constant 0 : i32
    return %c0_i32, %c0_i32_0 : i32, i32
  }
  func.func @transform_2(%arg0: i32) -> (i32, i32) {
    %c0_i32 = arith.constant 0 : i32
    %c0_i32_0 = arith.constant 0 : i32
    %c0_i32_1 = arith.constant 0 : i32
    return %c0_i32, %c0_i32_0 : i32, i32
  }
  func.func @transform_3(%arg0: i32) -> (i32, i32) {
    %c0_i32 = arith.constant 0 : i32
    %c0_i32_0 = arith.constant 0 : i32
    %c0_i32_1 = arith.constant 0 : i32
    return %c0_i32, %c0_i32_0 : i32, i32
  }
  func.func @transform_4(%arg0: i32) -> (i32, i32) {
    %c0_i32 = arith.constant 0 : i32
    %c0_i32_0 = arith.constant 0 : i32
    return %arg0, %c0_i32 : i32, i32
  }
  func.func @transform_5(%arg0: i32) -> (i32, i32) {
    %c0_i32 = arith.constant 0 : i32
    %c0_i32_0 = arith.constant 0 : i32
    return %arg0, %c0_i32 : i32, i32
  }
}

</mosaic_0001>

<llo_original>
// kernel: tpu_custom_call.1
$region0: #{tpu_custom_call.1}
  #allocation0 [shape = 'u32[]', space=smem, size = 0x4, offset = 0x4, fixed_abs, tag = 'smem constant byte address 0x4 - core index']
  #allocation1 [shape = 'u32[144,128]{1,0:T(1,128)}', space=vmem, size = 0x12000, scoped, tag = 'internal scratch']
  %s0 = inlined_call_operand.vmem [shape: f32[256,32], index: 0, kind: input, shape index: {}]
  %s1 = inlined_call_operand.vmem [shape: f32[32,32], index: 1, kind: input, shape index: {}]
  %s2 = inlined_call_operand.vmem [shape: f32[1,32], index: 2, kind: input, shape index: {}]
  %s3 = inlined_call_operand.vmem [shape: f32[32,64], index: 3, kind: input, shape index: {}]
  %s4 = inlined_call_operand.vmem [shape: f32[256,32], index: 4, kind: output, shape index: {0}]
  %s5 = inlined_call_operand.vmem [shape: f32[256,64], index: 5, kind: output, shape index: {1}]
  %6 = xla_tuple %s4, %s5
  %s7 = sld [smem:[#allocation0]]
  $region57: #{tpu_custom_call.1} parent=0
    _
  %s9 = ssub.s32 1, %s7
  %s10 = scalar_select 0, %s9, %s7
  loop: start=0, step=1, limit=4
  $region2: #{tpu_custom_call.1} parent=0 // loop_pre_header
    _
  $region3: #{tpu_custom_call.1} parent=0 // loop_header
    %s12 = sphi 0, %s16
    %p13 = scmp.ge.s32.totalorder %s12, 4
    %s22 = sphi 0, %s24
    %s25 = sphi 0, %s22
    %s26 = sphi 0, %s25
    %s42 = sphi 0, %s26
    %s46 = sphi 0, %s46
    %s48 = sphi 0, %s46
    %s49 = sphi 0, %s48
    %s63 = sphi 0, %s49
    %s67 = sphi 0, %s67
    %s69 = sphi 0, %s67
    %s70 = sphi 0, %s69
    %s84 = sphi 0, %s70
    %s88 = sphi 0, %s88
    %s90 = sphi 0, %s88
    %s91 = sphi 0, %s90
    %s105 = sphi 0, %s91
    %s111 = sphi 0, %s113
    %s114 = sphi 0, %s111
    %s115 = sphi 0, %s114
    %s131 = sphi 0, %s115
    %s137 = sphi 0, %s139
    %s140 = sphi 0, %s137
    %s141 = sphi 0, %s140
    %s157 = sphi 0, %s141
  $region4: #{tpu_custom_call.1} parent=0 // loop_header_branch
    %15 = sbr.rel (%p13) target = $region8
  $region5: #{tpu_custom_call.1} parent=0 // loop_body
    %s17 = ssub.s32 %s12, 1
    %s18 = ssub.s32 %s12, 2
    %s19 = sadd.s32 %s12, 1
    %s20 = ssub.s32 %s12, %s19
    %p21 = scmp.eq.s32.totalorder %s20, 0
    %s23 = sadd.s32 %s22, 1
    %s24 = scalar_select %p21, %s22, %s23
    %p27 = pneg %p21
    %p28 = scmp.eq.s32.totalorder %s12, 1
    %p29 = por %p27, %p28
    %p30 = scmp.ne.s32.totalorder %s22, %s25
    %p31 = scmp.eq.s32.totalorder %s12, 0
    %p32 = por %p30, %p31
    %p33 = scmp.ne.s32.totalorder %s22, %s25
    %p34 = scmp.eq.s32.totalorder %s17, 1
    %p35 = por %p33, %p34
    %p36 = scmp.ne.s32.totalorder %s25, %s26
    %p37 = scmp.eq.s32.totalorder %s17, 0
    %p38 = por %p36, %p37
    %p39 = scmp.ne.s32.totalorder %s25, %s26
    %p40 = scmp.eq.s32.totalorder %s18, 1
    %p41 = por %p39, %p40
    %p43 = scmp.ne.s32.totalorder %s26, %s42
    %p44 = scmp.eq.s32.totalorder %s18, 0
    %p45 = por %p43, %p44
    %s47 = sadd.s32 %s46, 1
    %p50 = scmp.eq.s32.totalorder %s12, 1
    %p51 = scmp.ne.s32.totalorder %s46, %s48
    %p52 = scmp.eq.s32.totalorder %s12, 0
    %p53 = por %p51, %p52
    %p54 = scmp.ne.s32.totalorder %s46, %s48
    %p55 = scmp.eq.s32.totalorder %s17, 1
    %p56 = por %p54, %p55
    %p57 = scmp.ne.s32.totalorder %s48, %s49
    %p58 = scmp.eq.s32.totalorder %s17, 0
    %p59 = por %p57, %p58
    %p60 = scmp.ne.s32.totalorder %s48, %s49
    %p61 = scmp.eq.s32.totalorder %s18, 1
    %p62 = por %p60, %p61
    %p64 = scmp.ne.s32.totalorder %s49, %s63
    %p65 = scmp.eq.s32.totalorder %s18, 0
    %p66 = por %p64, %p65
    %s68 = sadd.s32 %s67, 1
    %p71 = scmp.eq.s32.totalorder %s12, 1
    %p72 = scmp.ne.s32.totalorder %s67, %s69
    %p73 = scmp.eq.s32.totalorder %s12, 0
    %p74 = por %p72, %p73
    %p75 = scmp.ne.s32.totalorder %s67, %s69
    %p76 = scmp.eq.s32.totalorder %s17, 1
    %p77 = por %p75, %p76
    %p78 = scmp.ne.s32.totalorder %s69, %s70
    %p79 = scmp.eq.s32.totalorder %s17, 0
    %p80 = por %p78, %p79
    %p81 = scmp.ne.s32.totalorder %s69, %s70
    %p82 = scmp.eq.s32.totalorder %s18, 1
    %p83 = por %p81, %p82
    %p85 = scmp.ne.s32.totalorder %s70, %s84
    %p86 = scmp.eq.s32.totalorder %s18, 0
    %p87 = por %p85, %p86
    %s89 = sadd.s32 %s88, 1
    %p92 = scmp.eq.s32.totalorder %s12, 1
    %p93 = scmp.ne.s32.totalorder %s88, %s90
    %p94 = scmp.eq.s32.totalorder %s12, 0
    %p95 = por %p93, %p94
    %p96 = scmp.ne.s32.totalorder %s88, %s90
    %p97 = scmp.eq.s32.totalorder %s17, 1
    %p98 = por %p96, %p97
    %p99 = scmp.ne.s32.totalorder %s90, %s91
    %p100 = scmp.eq.s32.totalorder %s17, 0
    %p101 = por %p99, %p100
    %p102 = scmp.ne.s32.totalorder %s90, %s91
    %p103 = scmp.eq.s32.totalorder %s18, 1
    %p104 = por %p102, %p103
    %p106 = scmp.ne.s32.totalorder %s91, %s105
    %p107 = scmp.eq.s32.totalorder %s18, 0
    %p108 = por %p106, %p107
    %s109 = ssub.s32 %s12, %s19
    %p110 = scmp.eq.s32.totalorder %s109, 0
    %s112 = sadd.s32 %s111, 1
    %s113 = scalar_select %p110, %s111, %s112
    %p116 = pneg %p110
    %p117 = scmp.eq.s32.totalorder %s12, 1
    %p118 = por %p116, %p117
    %p119 = scmp.ne.s32.totalorder %s111, %s114
    %p120 = scmp.eq.s32.totalorder %s12, 0
    %p121 = por %p119, %p120
    %p122 = scmp.ne.s32.totalorder %s111, %s114
    %p123 = scmp.eq.s32.totalorder %s17, 1
    %p124 = por %p122, %p123
    %p125 = scmp.ne.s32.totalorder %s114, %s115
    %p126 = scmp.eq.s32.totalorder %s17, 0
    %p127 = por %p125, %p126
    %p128 = scmp.ne.s32.totalorder %s114, %s115
    %p129 = scmp.eq.s32.totalorder %s18, 1
    %p130 = por %p128, %p129
    %p132 = scmp.ne.s32.totalorder %s115, %s131
    %p133 = scmp.eq.s32.totalorder %s18, 0
    %p134 = por %p132, %p133
    %s135 = ssub.s32 %s12, %s19
    %p136 = scmp.eq.s32.totalorder %s135, 0
    %s138 = sadd.s32 %s137, 1
    %s139 = scalar_select %p136, %s137, %s138
    %p142 = pneg %p136
    %p143 = scmp.eq.s32.totalorder %s12, 1
    %p144 = por %p142, %p143
    %p145 = scmp.ne.s32.totalorder %s137, %s140
    %p146 = scmp.eq.s32.totalorder %s12, 0
    %p147 = por %p145, %p146
    %p148 = scmp.ne.s32.totalorder %s137, %s140
    %p149 = scmp.eq.s32.totalorder %s17, 1
    %p150 = por %p148, %p149
    %p151 = scmp.ne.s32.totalorder %s140, %s141
    %p152 = scmp.eq.s32.totalorder %s17, 0
    %p153 = por %p151, %p152
    %p154 = scmp.ne.s32.totalorder %s140, %s141
    %p155 = scmp.eq.s32.totalorder %s18, 1
    %p156 = por %p154, %p155
    %p158 = scmp.ne.s32.totalorder %s141, %s157
    %p159 = scmp.eq.s32.totalorder %s18, 0
    %p160 = por %p158, %p159
    %p161 = scmp.le.s32.totalorder 1, %s12
    %p162 = scmp.lt.s32.totalorder %s12, 3
    %p163 = pnand %p161, %p162
    %p164 = pneg %p163
    // Predicated region
    $region9: #{tpu_custom_call.1} parent=5 // pred_check
      _
    $region10: #{tpu_custom_call.1} parent=5 // pred_check_branch
      %166 = sbr.rel (%p163) target = $region12
    $region11: #{tpu_custom_call.1} parent=5 // pred_region
      %s167 = ssub.s32 %s12, 1
      // Predicated region
      $region13: #{tpu_custom_call.1} parent=11 // pred_check
        %p168 = pneg %p59
      $region14: #{tpu_custom_call.1} parent=11 // pred_check_branch
        %170 = sbr.rel (%p168) target = $region16
      $region15: #{tpu_custom_call.1} parent=11 // pred_region
        _
      $region16: #{tpu_custom_call.1} parent=11 // pred_fallthru
        _
      // Predicated region
      $region17: #{tpu_custom_call.1} parent=11 // pred_check
        %p171 = pneg %p80
      $region18: #{tpu_custom_call.1} parent=11 // pred_check_branch
        %173 = sbr.rel (%p171) target = $region20
      $region19: #{tpu_custom_call.1} parent=11 // pred_region
        _
      $region20: #{tpu_custom_call.1} parent=11 // pred_fallthru
        _
      // Predicated region
      $region21: #{tpu_custom_call.1} parent=11 // pred_check
        %p174 = pneg %p101
      $region22: #{tpu_custom_call.1} parent=11 // pred_check_branch
        %176 = sbr.rel (%p174) target = $region24
      $region23: #{tpu_custom_call.1} parent=11 // pred_region
        _
      $region24: #{tpu_custom_call.1} parent=11 // pred_fallthru
        _
    $region12: #{tpu_custom_call.1} parent=5 // pred_fallthru
      _
    %p177 = scmp.lt.s32.totalorder %s12, 2
    // Predicated region
    $region25: #{tpu_custom_call.1} parent=5 // pred_check
      %p178 = pneg %p177
    $region26: #{tpu_custom_call.1} parent=5 // pred_check_branch
      %180 = sbr.rel (%p178) target = $region28
    $region27: #{tpu_custom_call.1} parent=5 // pred_region
      // Predicated region
      $region29: #{tpu_custom_call.1} parent=27 // pred_check
        %p181 = pneg %p32
      $region30: #{tpu_custom_call.1} parent=27 // pred_check_branch
        %183 = sbr.rel (%p181) target = $region32
      $region31: #{tpu_custom_call.1} parent=27 // pred_region
        %s184 = smul.u32 16, %s12
        %p185 = scmp.lt.s32.totalorder %s184, 31
        %s186 = scalar_select %p185, %s184, 31
        %s187 = smul.addr %s186, 8
        %s188 = scalar_lea.vmem %s0, %s187
        %s189 = smul.u32 16, %s12
      $region32: #{tpu_custom_call.1} parent=27 // pred_fallthru
        _
    $region28: #{tpu_custom_call.1} parent=5 // pred_fallthru
      _
    %p190 = scmp.le.s32.totalorder 1, %s12
    %p191 = scmp.lt.s32.totalorder %s12, 3
    %p192 = pnand %p190, %p191
    %p193 = pneg %p192
    // Predicated region
    $region33: #{tpu_custom_call.1} parent=5 // pred_check
      _
    $region34: #{tpu_custom_call.1} parent=5 // pred_check_branch
      %195 = sbr.rel (%p192) target = $region36
    $region35: #{tpu_custom_call.1} parent=5 // pred_region
      %s196 = ssub.s32 %s12, 1
      %s197 = smul.u32 16, %s17
      %p198 = scmp.lt.s32.totalorder %s197, 31
      %s199 = scalar_select %p198, %s197, 31
      %s200 = smul.addr %s199, 8
      %s201 = scalar_lea.vmem %s0, %s200
      %p202 = pneg %p38
      %p203 = pneg %p35
      %p204 = pneg %p59
      %p205 = pneg %p56
      %p206 = pneg %p80
      %p207 = pneg %p77
      %p208 = pneg %p101
      %p209 = pneg %p98
      %p210 = pneg %p127
      %p211 = pneg %p124
      %s212 = smul.u32 16, %s17
      %p213 = scmp.lt.s32.totalorder %s212, 31
      %s214 = scalar_select %p213, %s212, 31
      %s215 = smul.addr %s214, 8
      %s216 = scalar_lea.vmem %s4, %s215
      %p217 = pneg %p153
      %p218 = pneg %p150
      %s219 = smul.u32 16, %s17
      %p220 = scmp.lt.s32.totalorder %s219, 31
      %s221 = scalar_select %p220, %s219, 31
      %s222 = smul.addr %s221, 8
      %s223 = scalar_lea.vmem %s5, %s222
      %s224 = smul.u32 16, %s17
      %p225 = scmp.lt.s32.totalorder %s224, 31
      %s226 = scalar_select %p225, %s224, 31
      %s227 = smul.addr %s226, 8
      %s228 = scalar_lea.vmem %s0, %s227
      %s229 = smul.u32 16, %s17
      %s230 = smul.u32 16, %s17
      %p231 = scmp.lt.s32.totalorder %s230, 31
      %s232 = scalar_select %p231, %s230, 31
      %s233 = smul.addr %s232, 8
      %s234 = scalar_lea.vmem %s4, %s233
      %s235 = smul.u32 16, %s17
      %s236 = smul.u32 16, %s17
      %p237 = scmp.lt.s32.totalorder %s236, 31
      %s238 = scalar_select %p237, %s236, 31
      %s239 = smul.addr %s238, 8
      %s240 = scalar_lea.vmem %s5, %s239
      %s241 = smul.u32 16, %s17
      %v243 = vld [vmem:[%s228] sm:$0xff]
      %v244 = vld [vmem:[%s228 + $0x8] sm:$0xff]
      %v245 = vld [vmem:[%s228 + $0x10] sm:$0xff]
      %v246 = vld [vmem:[%s228 + $0x18] sm:$0xff]
      %v247 = vld [vmem:[%s228 + $0x20] sm:$0xff]
      %v248 = vld [vmem:[%s228 + $0x28] sm:$0xff]
      %v249 = vld [vmem:[%s228 + $0x30] sm:$0xff]
      %v250 = vld [vmem:[%s228 + $0x38] sm:$0xff]
      %v251 = vld [vmem:[%s228 + $0x40] sm:$0xff]
      %v252 = vld [vmem:[%s228 + $0x48] sm:$0xff]
      %v253 = vld [vmem:[%s228 + $0x50] sm:$0xff]
      %v254 = vld [vmem:[%s228 + $0x58] sm:$0xff]
      %v255 = vld [vmem:[%s228 + $0x60] sm:$0xff]
      %v256 = vld [vmem:[%s228 + $0x68] sm:$0xff]
      %v257 = vld [vmem:[%s228 + $0x70] sm:$0xff]
      %v258 = vld [vmem:[%s228 + $0x78] sm:$0xff]
      %v259 = vpack.c.bf16 %v244, %v243
      %v260 = vpack.c.bf16 %v246, %v245
      %v261 = vpack.c.bf16 %v248, %v247
      %v262 = vpack.c.bf16 %v250, %v249
      %v263 = vpack.c.bf16 %v252, %v251
      %v264 = vpack.c.bf16 %v254, %v253
      %v265 = vpack.c.bf16 %v256, %v255
      %v266 = vpack.c.bf16 %v258, %v257
      %v267 = vld [vmem:[%s1] sm:$0xff]
      %v268 = vld [vmem:[%s1 + $0x8] sm:$0xff]
      %v269 = vld [vmem:[%s1 + $0x10] sm:$0xff]
      %v270 = vld [vmem:[%s1 + $0x18] sm:$0xff]
      %v271 = vpack.c.bf16 %v268, %v267
      %v272 = vpack.c.bf16 %v270, %v269
      %v273 = vld [vmem:[%s2] sm:$0x1]
      %v275 = vlaneseq
      %v276 = vshrl.u32 %v275, 7
      %v277 = vsub.s32 0, %v276
      %v278 = vrot.slane %v273, %v277
      %vm280 = vcmask 261120
      %v282 = vsel %vm280, %v259, 0
      %v285 = vsel %vm280, %v260, 0
      %v288 = vsel %vm280, %v261, 0
      %v291 = vsel %vm280, %v262, 0
      %v294 = vsel %vm280, %v263, 0
      %v297 = vsel %vm280, %v264, 0
      %v300 = vsel %vm280, %v265, 0
      %v303 = vsel %vm280, %v266, 0
      %305 = vmatprep.subr.bf16.mxu0 0
      %306 = vmatpush1.bf16.msra.mxu0 %v271
      %307 = vmatprep.subr.bf16.mxu0 0
      %308 = vmatpush1.bf16.msra.mxu0 %v272
      %309 = vmatprep.subr.bf16.mxu0 0
      %310 = vmatpush1.bf16.msra.mxu0 0
      %311 = vmatprep.subr.bf16.mxu0 0
      %312 = vmatpush1.bf16.msra.mxu0 0
      %313 = vmatprep.subr.bf16.mxu0 0
      %314 = vmatpush1.bf16.msra.mxu0 0
      %315 = vmatprep.subr.bf16.mxu0 0
      %316 = vmatpush1.bf16.msra.mxu0 0
      %317 = vmatprep.subr.bf16.mxu0 0
      %318 = vmatpush1.bf16.msra.mxu0 0
      %319 = vmatprep.subr.bf16.mxu0 0
      %320 = vmatpush1.bf16.msra.mxu0 0
      %321 = vmatprep.subr.bf16.mxu0 0
      %322 = vmatpush1.bf16.msra.mxu0 0
      %323 = vmatprep.subr.bf16.mxu0 0
      %324 = vmatpush1.bf16.msra.mxu0 0
      %325 = vmatprep.subr.bf16.mxu0 0
      %326 = vmatpush1.bf16.msra.mxu0 0
      %327 = vmatprep.subr.bf16.mxu0 0
      %328 = vmatpush1.bf16.msra.mxu0 0
      %329 = vmatprep.subr.bf16.mxu0 0
      %330 = vmatpush1.bf16.msra.mxu0 0
      %331 = vmatprep.subr.bf16.mxu0 0
      %332 = vmatpush1.bf16.msra.mxu0 0
      %333 = vmatprep.subr.bf16.mxu0 0
      %334 = vmatpush1.bf16.msra.mxu0 0
      %335 = vmatprep.subr.bf16.mxu0 0
      %336 = vmatpush1.bf16.msra.mxu0 0
      %337 = vmatprep.mubr.bf16.mxu0 0
      %338 = vmatmul.mubr.bf16.gmra.mrb[0].mxu0 %v282
      %v339 = vpop.f32.mrb[0].mxu0
      %v340 = vadd.f32 %v278, %v339
      %v341 = vpop.f32.mrb[0].mxu0
      %v342 = vpop.f32.mrb[0].mxu0
      %v343 = vadd.f32 %v278, %v342
      %v344 = vpop.f32.mrb[0].mxu0
      %345 = vmatprep.mubr.bf16.mxu0 0
      %346 = vmatmul.mubr.bf16.gmra.mrb[0].mxu0 %v285
      %v347 = vpop.f32.mrb[0].mxu0
      %v348 = vadd.f32 %v278, %v347
      %v349 = vpop.f32.mrb[0].mxu0
      %v350 = vpop.f32.mrb[0].mxu0
      %v351 = vadd.f32 %v278, %v350
      %v352 = vpop.f32.mrb[0].mxu0
      %353 = vmatprep.mubr.bf16.mxu0 0
      %354 = vmatmul.mubr.bf16.gmra.mrb[0].mxu0 %v288
      %v355 = vpop.f32.mrb[0].mxu0
      %v356 = vadd.f32 %v278, %v355
      %v357 = vpop.f32.mrb[0].mxu0
      %v358 = vpop.f32.mrb[0].mxu0
      %v359 = vadd.f32 %v278, %v358
      %v360 = vpop.f32.mrb[0].mxu0
      %361 = vmatprep.mubr.bf16.mxu0 0
      %362 = vmatmul.mubr.bf16.gmra.mrb[0].mxu0 %v291
      %v363 = vpop.f32.mrb[0].mxu0
      %v364 = vadd.f32 %v278, %v363
      %v365 = vpop.f32.mrb[0].mxu0
      %v366 = vpop.f32.mrb[0].mxu0
      %v367 = vadd.f32 %v278, %v366
      %v368 = vpop.f32.mrb[0].mxu0
      %369 = vmatprep.mubr.bf16.mxu0 0
      %370 = vmatmul.mubr.bf16.gmra.mrb[0].mxu0 %v294
      %v371 = vpop.f32.mrb[0].mxu0
      %v372 = vadd.f32 %v278, %v371
      %v373 = vpop.f32.mrb[0].mxu0
      %v374 = vpop.f32.mrb[0].mxu0
      %v375 = vadd.f32 %v278, %v374
      %v376 = vpop.f32.mrb[0].mxu0
      %377 = vmatprep.mubr.bf16.mxu0 0
      %378 = vmatmul.mubr.bf16.gmra.mrb[0].mxu0 %v297
      %v379 = vpop.f32.mrb[0].mxu0
      %v380 = vadd.f32 %v278, %v379
      %v381 = vpop.f32.mrb[0].mxu0
      %v382 = vpop.f32.mrb[0].mxu0
      %v383 = vadd.f32 %v278, %v382
      %v384 = vpop.f32.mrb[0].mxu0
      %385 = vmatprep.mubr.bf16.mxu0 0
      %386 = vmatmul.mubr.bf16.gmra.mrb[0].mxu0 %v300
      %v387 = vpop.f32.mrb[0].mxu0
      %v388 = vadd.f32 %v278, %v387
      %v389 = vpop.f32.mrb[0].mxu0
      %v390 = vpop.f32.mrb[0].mxu0
      %v391 = vadd.f32 %v278, %v390
      %v392 = vpop.f32.mrb[0].mxu0
      %393 = vmatprep.mubr.bf16.mxu0 0
      %394 = vmatmul.mubr.bf16.gmra.mrb[0].mxu0 %v303
      %v395 = vpop.f32.mrb[0].mxu0
      %v396 = vadd.f32 %v278, %v395
      %v397 = vpop.f32.mrb[0].mxu0
      %v398 = vpop.f32.mrb[0].mxu0
      %v399 = vadd.f32 %v278, %v398
      %v400 = vpop.f32.mrb[0].mxu0
      %401 = vdwg.mxu0
      %v402 = vmax.f32 %v340, 0.0
      %v403 = vmax.f32 %v343, 0.0
      %v404 = vmax.f32 %v348, 0.0
      %v405 = vmax.f32 %v351, 0.0
      %v406 = vmax.f32 %v356, 0.0
      %v407 = vmax.f32 %v359, 0.0
      %v408 = vmax.f32 %v364, 0.0
      %v409 = vmax.f32 %v367, 0.0
      %v410 = vmax.f32 %v372, 0.0
      %v411 = vmax.f32 %v375, 0.0
      %v412 = vmax.f32 %v380, 0.0
      %v413 = vmax.f32 %v383, 0.0
      %v414 = vmax.f32 %v388, 0.0
      %v415 = vmax.f32 %v391, 0.0
      %v416 = vmax.f32 %v396, 0.0
      %v417 = vmax.f32 %v399, 0.0
      %418 = vst.msk [vmem:[%s234] sm:$0xff] %vm280, %v402
      %419 = vst.msk [vmem:[%s234 + $0x8] sm:$0xff] %vm280, %v403
      %420 = vst.msk [vmem:[%s234 + $0x10] sm:$0xff] %vm280, %v404
      %421 = vst.msk [vmem:[%s234 + $0x18] sm:$0xff] %vm280, %v405
      %422 = vst.msk [vmem:[%s234 + $0x20] sm:$0xff] %vm280, %v406
      %423 = vst.msk [vmem:[%s234 + $0x28] sm:$0xff] %vm280, %v407
      %424 = vst.msk [vmem:[%s234 + $0x30] sm:$0xff] %vm280, %v408
      %425 = vst.msk [vmem:[%s234 + $0x38] sm:$0xff] %vm280, %v409
      %426 = vst.msk [vmem:[%s234 + $0x40] sm:$0xff] %vm280, %v410
      %427 = vst.msk [vmem:[%s234 + $0x48] sm:$0xff] %vm280, %v411
      %428 = vst.msk [vmem:[%s234 + $0x50] sm:$0xff] %vm280, %v412
      %429 = vst.msk [vmem:[%s234 + $0x58] sm:$0xff] %vm280, %v413
      %430 = vst.msk [vmem:[%s234 + $0x60] sm:$0xff] %vm280, %v414
      %431 = vst.msk [vmem:[%s234 + $0x68] sm:$0xff] %vm280, %v415
      %432 = vst.msk [vmem:[%s234 + $0x70] sm:$0xff] %vm280, %v416
      %433 = vst.msk [vmem:[%s234 + $0x78] sm:$0xff] %vm280, %v417
      %v434 = vld [vmem:[%s3] sm:$0xff]
      %v435 = vld [vmem:[%s3 + $0x8] sm:$0xff]
      %v436 = vld [vmem:[%s3 + $0x10] sm:$0xff]
      %v437 = vld [vmem:[%s3 + $0x18] sm:$0xff]
      %v438 = vpack.c.bf16 %v435, %v434
      %v439 = vpack.c.bf16 %v437, %v436
      %440 = vmatprep.subr.bf16.mxu0 0
      %441 = vmatpush1.bf16.msra.mxu0 %v438
      %442 = vmatprep.subr.bf16.mxu0 0
      %443 = vmatpush1.bf16.msra.mxu0 %v439
      %444 = vmatprep.subr.bf16.mxu0 0
      %445 = vmatpush1.bf16.msra.mxu0 0
      %446 = vmatprep.subr.bf16.mxu0 0
      %447 = vmatpush1.bf16.msra.mxu0 0
      %448 = vmatprep.subr.bf16.mxu0 0
      %449 = vmatpush1.bf16.msra.mxu0 0
      %450 = vmatprep.subr.bf16.mxu0 0
      %451 = vmatpush1.bf16.msra.mxu0 0
      %452 = vmatprep.subr.bf16.mxu0 0
      %453 = vmatpush1.bf16.msra.mxu0 0
      %454 = vmatprep.subr.bf16.mxu0 0
      %455 = vmatpush1.bf16.msra.mxu0 0
      %456 = vmatprep.subr.bf16.mxu0 0
      %457 = vmatpush1.bf16.msra.mxu0 0
      %458 = vmatprep.subr.bf16.mxu0 0
      %459 = vmatpush1.bf16.msra.mxu0 0
      %460 = vmatprep.subr.bf16.mxu0 0
      %461 = vmatpush1.bf16.msra.mxu0 0
      %462 = vmatprep.subr.bf16.mxu0 0
      %463 = vmatpush1.bf16.msra.mxu0 0
      %464 = vmatprep.subr.bf16.mxu0 0
      %465 = vmatpush1.bf16.msra.mxu0 0
      %466 = vmatprep.subr.bf16.mxu0 0
      %467 = vmatpush1.bf16.msra.mxu0 0
      %468 = vmatprep.subr.bf16.mxu0 0
      %469 = vmatpush1.bf16.msra.mxu0 0
      %470 = vmatprep.subr.bf16.mxu0 0
      %471 = vmatpush1.bf16.msra.mxu0 0
      %472 = vmatprep.mubr.bf16.mxu0 0
      %473 = vmatmul.mubr.bf16.gmra.mrb[0].mxu0 %v282
      %v474 = vpop.f32.mrb[0].mxu0
      %v475 = vadd.f32 0.0, %v474
      %v476 = vpop.f32.mrb[0].mxu0
      %v477 = vpop.f32.mrb[0].mxu0
      %v478 = vadd.f32 0.0, %v477
      %v479 = vpop.f32.mrb[0].mxu0
      %480 = vmatprep.mubr.bf16.mxu0 0
      %481 = vmatmul.mubr.bf16.gmra.mrb[0].mxu0 %v285
      %v482 = vpop.f32.mrb[0].mxu0
      %v483 = vadd.f32 0.0, %v482
      %v484 = vpop.f32.mrb[0].mxu0
      %v485 = vpop.f32.mrb[0].mxu0
      %v486 = vadd.f32 0.0, %v485
      %v487 = vpop.f32.mrb[0].mxu0
      %488 = vmatprep.mubr.bf16.mxu0 0
      %489 = vmatmul.mubr.bf16.gmra.mrb[0].mxu0 %v288
      %v490 = vpop.f32.mrb[0].mxu0
      %v491 = vadd.f32 0.0, %v490
      %v492 = vpop.f32.mrb[0].mxu0
      %v493 = vpop.f32.mrb[0].mxu0
      %v494 = vadd.f32 0.0, %v493
      %v495 = vpop.f32.mrb[0].mxu0
      %496 = vmatprep.mubr.bf16.mxu0 0
      %497 = vmatmul.mubr.bf16.gmra.mrb[0].mxu0 %v291
      %v498 = vpop.f32.mrb[0].mxu0
      %v499 = vadd.f32 0.0, %v498
      %v500 = vpop.f32.mrb[0].mxu0
      %v501 = vpop.f32.mrb[0].mxu0
      %v502 = vadd.f32 0.0, %v501
      %v503 = vpop.f32.mrb[0].mxu0
      %504 = vmatprep.mubr.bf16.mxu0 0
      %505 = vmatmul.mubr.bf16.gmra.mrb[0].mxu0 %v294
      %v506 = vpop.f32.mrb[0].mxu0
      %v507 = vadd.f32 0.0, %v506
      %v508 = vpop.f32.mrb[0].mxu0
      %v509 = vpop.f32.mrb[0].mxu0
      %v510 = vadd.f32 0.0, %v509
      %v511 = vpop.f32.mrb[0].mxu0
      %512 = vmatprep.mubr.bf16.mxu0 0
      %513 = vmatmul.mubr.bf16.gmra.mrb[0].mxu0 %v297
      %v514 = vpop.f32.mrb[0].mxu0
      %v515 = vadd.f32 0.0, %v514
      %v516 = vpop.f32.mrb[0].mxu0
      %v517 = vpop.f32.mrb[0].mxu0
      %v518 = vadd.f32 0.0, %v517
      %v519 = vpop.f32.mrb[0].mxu0
      %520 = vmatprep.mubr.bf16.mxu0 0
      %521 = vmatmul.mubr.bf16.gmra.mrb[0].mxu0 %v300
      %v522 = vpop.f32.mrb[0].mxu0
      %v523 = vadd.f32 0.0, %v522
      %v524 = vpop.f32.mrb[0].mxu0
      %v525 = vpop.f32.mrb[0].mxu0
      %v526 = vadd.f32 0.0, %v525
      %v527 = vpop.f32.mrb[0].mxu0
      %528 = vmatprep.mubr.bf16.mxu0 0
      %529 = vmatmul.mubr.bf16.gmra.mrb[0].mxu0 %v303
      %v530 = vpop.f32.mrb[0].mxu0
      %v531 = vadd.f32 0.0, %v530
      %v532 = vpop.f32.mrb[0].mxu0
      %v533 = vpop.f32.mrb[0].mxu0
      %v534 = vadd.f32 0.0, %v533
      %v535 = vpop.f32.mrb[0].mxu0
      %536 = vdwg.mxu0
      %vm537 = vcmask 523264
      %538 = vst.msk [vmem:[%s240] sm:$0xff] %vm537, %v475
      %539 = vst.msk [vmem:[%s240 + $0x8] sm:$0xff] %vm537, %v478
      %540 = vst.msk [vmem:[%s240 + $0x10] sm:$0xff] %vm537, %v483
      %541 = vst.msk [vmem:[%s240 + $0x18] sm:$0xff] %vm537, %v486
      %542 = vst.msk [vmem:[%s240 + $0x20] sm:$0xff] %vm537, %v491
      %543 = vst.msk [vmem:[%s240 + $0x28] sm:$0xff] %vm537, %v494
      %544 = vst.msk [vmem:[%s240 + $0x30] sm:$0xff] %vm537, %v499
      %545 = vst.msk [vmem:[%s240 + $0x38] sm:$0xff] %vm537, %v502
      %546 = vst.msk [vmem:[%s240 + $0x40] sm:$0xff] %vm537, %v507
      %547 = vst.msk [vmem:[%s240 + $0x48] sm:$0xff] %vm537, %v510
      %548 = vst.msk [vmem:[%s240 + $0x50] sm:$0xff] %vm537, %v515
      %549 = vst.msk [vmem:[%s240 + $0x58] sm:$0xff] %vm537, %v518
      %550 = vst.msk [vmem:[%s240 + $0x60] sm:$0xff] %vm537, %v523
      %551 = vst.msk [vmem:[%s240 + $0x68] sm:$0xff] %vm537, %v526
      %552 = vst.msk [vmem:[%s240 + $0x70] sm:$0xff] %vm537, %v531
      %553 = vst.msk [vmem:[%s240 + $0x78] sm:$0xff] %vm537, %v534
      %s554 = smul.u32 16, %s17
      %p555 = scmp.lt.s32.totalorder %s554, 31
      %s556 = scalar_select %p555, %s554, 31
      %s557 = smul.addr %s556, 8
      %s558 = scalar_lea.vmem %s4, %s557
      %s559 = smul.u32 16, %s17
      %p560 = scmp.lt.s32.totalorder %s559, 31
      %s561 = scalar_select %p560, %s559, 31
      %s562 = smul.addr %s561, 8
      %s563 = scalar_lea.vmem %s5, %s562
      // Predicated region
      $region37: #{tpu_custom_call.1} parent=35 // pred_check
        %p564 = pneg %p124
      $region38: #{tpu_custom_call.1} parent=35 // pred_check_branch
        %566 = sbr.rel (%p564) target = $region40
      $region39: #{tpu_custom_call.1} parent=35 // pred_region
        %s567 = smul.u32 16, %s17
      $region40: #{tpu_custom_call.1} parent=35 // pred_fallthru
        _
      // Predicated region
      $region41: #{tpu_custom_call.1} parent=35 // pred_check
        %p568 = pneg %p150
      $region42: #{tpu_custom_call.1} parent=35 // pred_check_branch
        %570 = sbr.rel (%p568) target = $region44
      $region43: #{tpu_custom_call.1} parent=35 // pred_region
        %s571 = smul.u32 16, %s17
      $region44: #{tpu_custom_call.1} parent=35 // pred_fallthru
        _
    $region36: #{tpu_custom_call.1} parent=5 // pred_fallthru
      _
    %p572 = scmp.le.s32.totalorder 2, %s12
    // Predicated region
    $region45: #{tpu_custom_call.1} parent=5 // pred_check
      %p573 = pneg %p572
    $region46: #{tpu_custom_call.1} parent=5 // pred_check_branch
      %575 = sbr.rel (%p573) target = $region48
    $region47: #{tpu_custom_call.1} parent=5 // pred_region
      %s576 = ssub.s32 %s12, 2
      // Predicated region
      $region49: #{tpu_custom_call.1} parent=47 // pred_check
        %p577 = pneg %p130
      $region50: #{tpu_custom_call.1} parent=47 // pred_check_branch
        %579 = sbr.rel (%p577) target = $region52
      $region51: #{tpu_custom_call.1} parent=47 // pred_region
        %s580 = smul.u32 16, %s18
        %p581 = scmp.lt.s32.totalorder %s580, 31
        %s582 = scalar_select %p581, %s580, 31
        %s583 = smul.addr %s582, 8
        %s584 = scalar_lea.vmem %s4, %s583
      $region52: #{tpu_custom_call.1} parent=47 // pred_fallthru
        _
      // Predicated region
      $region53: #{tpu_custom_call.1} parent=47 // pred_check
        %p585 = pneg %p156
      $region54: #{tpu_custom_call.1} parent=47 // pred_check_branch
        %587 = sbr.rel (%p585) target = $region56
      $region55: #{tpu_custom_call.1} parent=47 // pred_region
        %s588 = smul.u32 16, %s18
        %p589 = scmp.lt.s32.totalorder %s588, 31
        %s590 = scalar_select %p589, %s588, 31
        %s591 = smul.addr %s590, 8
        %s592 = scalar_lea.vmem %s5, %s591
      $region56: #{tpu_custom_call.1} parent=47 // pred_fallthru
        _
    $region48: #{tpu_custom_call.1} parent=5 // pred_fallthru
      _
  $region6: #{tpu_custom_call.1} parent=0 // loop_footer
    %s16 = sadd.s32 1, %s12
  $region7: #{tpu_custom_call.1} parent=0 // loop_footer_branch
    %11 = sbr.rel target = $region3
  $region8: #{tpu_custom_call.1} parent=0 // loop_exit
    _

</llo_original>
